<compile_context>
chip_gen: v7x
topology: tpu7x:2x2x1
jax: 0.10.0
libtpu: 0.0.40
codegen_flags: <defaults>
</compile_context>

<pallas_src>
import functools

import jax
import jax.numpy as jnp
from jax import lax
from jax.experimental import pallas as pl
from jax.experimental.pallas import tpu as pltpu


# ----------------------------------------------------------------------------
# Kernel
# ----------------------------------------------------------------------------
def _srms_norm_kernel(*refs, eps: float, has_residual: bool, emit_residual: bool):
    """One grid step normalizes a (tm, dim) tile of independent rows."""
    if has_residual:
        x_ref, r_ref = refs[0], refs[1]
        out_refs = refs[2:]
        # Fused residual add, accumulated in f32 regardless of input dtypes
        # (cast happens per-vreg inside the kernel; nothing extra hits HBM).
        xf = x_ref[...].astype(jnp.float32) + r_ref[...].astype(jnp.float32)
    else:
        x_ref = refs[0]
        out_refs = refs[1:]
        xf = x_ref[...].astype(jnp.float32)

    if emit_residual:
        o_ref, res_ref = out_refs
        res_ref[...] = xf.astype(res_ref.dtype)
    else:
        o_ref = out_refs[0]

    # Sum-of-squares reduction + rsqrt in f32 for accuracy.  rsqrt goes to the
    # EUP (separate bundle slot), the reduce to the XLU -- both free relative
    # to the DMA bound.
    ms = jnp.mean(xf * xf, axis=-1, keepdims=True)
    inv = lax.rsqrt(ms + eps)
    o_ref[...] = (xf * inv).astype(o_ref.dtype)


# ----------------------------------------------------------------------------
# Tile sizing
# ----------------------------------------------------------------------------
_TARGET_TILE_BYTES = 8 * 1024 * 1024  # per-stream per-step; amortizes step cost
_ROW_CAP = 8192                       # hard cap on tile rows
_MIN_GRID_STEPS = 4                   # >= 2 steps per TC on v7x (2 TCs);
                                      # neutral on single-TC v5e/v6e


def _round_up(n: int, m: int) -> int:
    return (n + m - 1) // m * m


def _vmem_capacity_bytes() -> int:
    """Physical VMEM per TensorCore; conservative 64 MiB if query fails."""
    cap = 64 * 1024 * 1024
    try:
        info = pltpu.get_tpu_info()
        cap = int(getattr(info, "vmem_capacity_bytes", cap)) or cap
    except Exception:
        pass
    return cap


def _pick_tile(rows: int, dim: int, in_dtypes, out_dtypes):
    """Pick tile height (rows) and a vmem_limit for the pallas_call."""
    itemsizes = [jnp.dtype(d).itemsize for d in list(in_dtypes) + list(out_dtypes)]
    x_itemsize = jnp.dtype(in_dtypes[0]).itemsize

    # Sublane packing: 8 rows for 32-bit, 16 for bf16/f16, 32 for int8/fp8.
    # Use the coarsest packing among all streams so every tile is aligned.
    sublane = max(8 * max(1, 4 // max(1, it)) for it in itemsizes)

    # VMEM per tile row: double-buffered inputs + outputs, plus two f32
    # working tiles (the promoted/added activation and the squared/scaled
    # intermediate) so the sizer's choice stays spill-free.
    bytes_per_row = dim * (sum(2 * it for it in itemsizes) + 2 * 4)

    cap = _vmem_capacity_bytes()
    budget = min(int(cap * 0.45), 56 * 1024 * 1024)

    tm_budget = max(sublane, budget // bytes_per_row)
    tm_target = max(sublane, _TARGET_TILE_BYTES // (dim * x_itemsize))
    tm = min(tm_budget, tm_target, _ROW_CAP)
    tm = max(sublane, (tm // sublane) * sublane)

    # Keep >= _MIN_GRID_STEPS grid steps when there are enough rows so that
    # each TensorCore (v7x has two) still gets >= 2 steps and keeps its
    # input/output double-buffering overlapped.
    if rows > sublane:
        tm = min(tm, max(sublane, _round_up(pl.cdiv(rows, _MIN_GRID_STEPS), sublane)))
    tm = min(tm, _round_up(rows, sublane))

    vmem_limit = int(tm * bytes_per_row) + (4 << 20)      # + headroom
    vmem_limit = min(max(vmem_limit, 32 << 20), cap - (16 << 20))
    return tm, vmem_limit


# ----------------------------------------------------------------------------
# Wrapper
# ----------------------------------------------------------------------------
def srms_norm(
    x: jax.Array,
    dim: int,
    eps: float = 1e-5,
    *,
    residual: jax.Array | None = None,
    return_residual: bool = False,
):
    """SRMSNorm forward. `dim` must equal x.shape[-1].

    Returns y, or (y, x + residual) when return_residual=True and residual
    is provided.  The returned residual keeps the promoted dtype of
    (x.dtype, residual.dtype) so an fp32 residual stream stays fp32.
    """
    assert x.shape[-1] == dim, f"expected last dim {dim}, got {x.shape[-1]}"
    # NOTE: dim < 128 (like the self-test's dim=32) is correct but hits masked
    # lane stores; production dims >= 128 are lane-dense and run at roofline.
    # TODO(synk): pack 128//dim logical rows per lane-row + segmented reduce
    #             for narrow dims if they matter in production.
    orig_shape = x.shape
    x2d = x.reshape(-1, dim)
    rows = x2d.shape[0]

    has_residual = residual is not None
    emit_residual = has_residual and return_residual

    args = [x2d]
    in_dtypes = [x.dtype]
    if has_residual:
        assert residual.shape == x.shape
        args.append(residual.reshape(-1, dim))      # native dtype; cast in-kernel
        in_dtypes.append(residual.dtype)

    out_dtypes = [x.dtype]
    if emit_residual:
        out_dtypes.append(jnp.promote_types(x.dtype, residual.dtype))

    tm, vmem_limit = _pick_tile(rows, dim, in_dtypes, out_dtypes)
    grid = (pl.cdiv(rows, tm),)

    block = pl.BlockSpec((tm, dim), lambda i: (i, 0))
    in_specs = [block] * len(args)
    out_specs = [block] * len(out_dtypes)
    out_shape = [jax.ShapeDtypeStruct((rows, dim), dt) for dt in out_dtypes]

    kernel = functools.partial(
        _srms_norm_kernel,
        eps=eps,
        has_residual=has_residual,
        emit_residual=emit_residual,
    )

    outs = pl.pallas_call(
        kernel,
        out_shape=out_shape,
        grid_spec=pltpu.PrefetchScalarGridSpec(
            num_scalar_prefetch=0,
            grid=grid,
            in_specs=in_specs,
            out_specs=out_specs,
        ),
        compiler_params=pltpu.CompilerParams(
            dimension_semantics=("parallel",),
            vmem_limit_bytes=vmem_limit,
        ),
    )(*args)

    y = outs[0].reshape(orig_shape)
    if emit_residual:
        return y, outs[1].reshape(orig_shape)
    return y


class SRMSNorm:
    """JAX/Pallas port of xmixers SRMSNorm (no parameters)."""

    def __init__(self, dim: int, eps: float = 1e-5, **kwargs):
        self.dim = dim
        self.eps = eps

    def __call__(self, x, residual=None, return_residual=False):
        if residual is not None:
            if return_residual:
                return srms_norm(
                    x, self.dim, self.eps, residual=residual, return_residual=True
                )
            return srms_norm(x, self.dim, self.eps, residual=residual)
        y = srms_norm(x, self.dim, self.eps)
        if return_residual:
            return y, x
        return y


# ----------------------------------------------------------------------------
# Reference & self-test
# ----------------------------------------------------------------------------
def _reference(x, eps):
    xf = x.astype(jnp.float32)
    ms = jnp.mean(xf * xf, axis=-1, keepdims=True)
    return (xf * lax.rsqrt(ms + eps)).astype(x.dtype)


if __name__ == "__main__":
    key = jax.random.PRNGKey(0)
    batch, seq, hidden = 2, 8, 32
    k1, k2 = jax.random.split(key)
    x = jax.random.normal(k1, (batch, seq, hidden), dtype=jnp.float32)
    r = jax.random.normal(k2, (batch, seq, hidden), dtype=jnp.float32)

    norm = SRMSNorm(dim=hidden, eps=1e-5)

    # Default forward (residual=None).
    y = jax.block_until_ready(norm(x))
    ref = _reference(x, 1e-5)
    assert y.shape == x.shape and y.dtype == x.dtype
    assert jnp.allclose(y, ref, atol=1e-5, rtol=1e-5)

    # Fused residual path (+ return_residual).
    y2, res2 = norm(x, residual=r, return_residual=True)
    y2 = jax.block_until_ready(y2)
    ref2 = _reference(x + r, 1e-5)
    assert jnp.allclose(y2, ref2, atol=1e-5, rtol=1e-5)
    assert jnp.allclose(res2, x + r, atol=1e-6, rtol=1e-6)

    # Residual path without return_residual.
    y3 = jax.block_until_ready(norm(x, residual=r))
    assert jnp.allclose(y3, ref2, atol=1e-5, rtol=1e-5)

    print("KERNEL_OK")
</pallas_src>

<mosaic_0001>
module attributes {stable_mosaic.version = 11 : i64} {
  func.func @_srms_norm_kernel(%arg0: i32, %arg1: memref<8x32xf32, #tpu.memory_space<vmem>>, %arg2: memref<8x32xf32, #tpu.memory_space<vmem>>) attributes {dimension_semantics = [#tpu.dimension_semantics<parallel>], iteration_bounds = array<i64: 2>, scalar_prefetch = 0 : i64, scratch_operands = 0 : i64, tpu.core_type = #tpu.core_type<tc>, window_params = [{transform_indices = @transform_0, window_bounds = array<i64: 8, 32>}, {transform_indices = @transform_1, window_bounds = array<i64: 8, 32>}]} {
    %c0 = arith.constant 0 : index
    %c0_0 = arith.constant 0 : index
    %0 = vector.load %arg1[%c0, %c0_0] : memref<8x32xf32, #tpu.memory_space<vmem>>, vector<8x32xf32>
    %1 = arith.mulf %0, %0 : vector<8x32xf32>
    %cst = arith.constant dense<0.000000e+00> : vector<8xf32>
    %2 = vector.multi_reduction <add>, %1, %cst [1] : vector<8x32xf32> to vector<8xf32>
    %3 = vector.shape_cast %2 : vector<8xf32> to vector<8x1xf32>
    %cst_1 = arith.constant 3.200000e+01 : f32
    %4 = vector.broadcast %cst_1 : f32 to vector<8x1xf32>
    %5 = arith.divf %3, %4 : vector<8x1xf32>
    %cst_2 = arith.constant 9.99999974E-6 : f32
    %6 = vector.broadcast %cst_2 : f32 to vector<8x1xf32>
    %7 = arith.addf %5, %6 : vector<8x1xf32>
    %8 = math.rsqrt %7 : vector<8x1xf32>
    %9 = vector.broadcast %8 : vector<8x1xf32> to vector<8x32xf32>
    %10 = arith.mulf %0, %9 : vector<8x32xf32>
    %c0_3 = arith.constant 0 : index
    %c0_4 = arith.constant 0 : index
    %11 = vector.load %arg2[%c0_3, %c0_4] : memref<8x32xf32, #tpu.memory_space<vmem>>, vector<8x32xf32>
    tpu.vector_store %arg2[%c0_3, %c0_4], %10 {strides = array<i32>} : memref<8x32xf32, #tpu.memory_space<vmem>>, vector<8x32xf32>,
    return
  }
  func.func @transform_0(%arg0: i32) -> (i32, i32) {
    %c0_i32 = arith.constant 0 : i32
    %c0_i32_0 = arith.constant 0 : i32
    return %arg0, %c0_i32 : i32, i32
  }
  func.func @transform_1(%arg0: i32) -> (i32, i32) {
    %c0_i32 = arith.constant 0 : i32
    %c0_i32_0 = arith.constant 0 : i32
    return %arg0, %c0_i32 : i32, i32
  }
}

</mosaic_0001>

<llo_original>
// kernel: tpu_custom_call.1
$region0: #{tpu_custom_call.1}
  #allocation0 [shape = 'u32[]', space=smem, size = 0x4, offset = 0x4, fixed_abs, tag = 'smem constant byte address 0x4 - core index']
  #allocation1 [shape = 'u32[144,128]{1,0:T(1,128)}', space=vmem, size = 0x12000, scoped, tag = 'internal scratch']
  %s0 = inlined_call_operand.hbm [shape: f32[16,32], index: 0, kind: input, shape index: {}]
  %s1 = inlined_call_operand.hbm [shape: f32[16,32], index: 1, kind: output, shape index: {}]
  %s2 = sld [smem:[#allocation0]]
  $region41: #{tpu_custom_call.1} parent=0
    _
  %s4 = ssub.s32 1, %s2
  %s5 = scalar_select 0, %s4, %s2
  $region1: #{tpu_custom_call.1} parent=0
    #allocation2 [shape = 'u8[8192]{0}', space=vmem, size = 0x2000, scoped, tag = 'input window, operand 0']
    #allocation3 [shape = 's32[2]{0}', space=sflag, size = 0x8, scoped, tag = 'scoped memory for tpu_custom_call.1']
    #allocation4 [shape = 's32[2]{0}', space=sflag, size = 0x8, scoped, tag = 'scoped memory for tpu_custom_call.1']
    #allocation5 [shape = 'u8[8192]{0}', space=vmem, size = 0x2000, scoped, tag = 'output window, operand 0']
    %6 = vsyncpa [#allocation3], 0
    %s7 = scalar_lea.sflag [#allocation3], 1
    %8 = vsyncpa %s7, 0
    %9 = vsyncpa [#allocation4], 0
    %s10 = scalar_lea.sflag [#allocation4], 1
    %11 = vsyncpa %s10, 0
    loop: start=0, step=1, limit=4
    $region2: #{tpu_custom_call.1} parent=1 // loop_pre_header
      _
    $region3: #{tpu_custom_call.1} parent=1 // loop_header
      %s13 = sphi 0, %s17
      %p14 = scmp.ge.s32.totalorder %s13, 4
      %s23 = sphi 0, %s25
      %s26 = sphi 0, %s23
      %s27 = sphi 0, %s26
      %s43 = sphi 0, %s27
      %s49 = sphi 0, %s51
      %s52 = sphi 0, %s49
      %s53 = sphi 0, %s52
      %s69 = sphi 0, %s53
    $region4: #{tpu_custom_call.1} parent=1 // loop_header_branch
      %16 = sbr.rel (%p14) target = $region8
    $region5: #{tpu_custom_call.1} parent=1 // loop_body
      %s18 = ssub.s32 %s13, 1
      %s19 = ssub.s32 %s13, 2
      %s20 = sadd.s32 %s13, 1
      %s21 = ssub.s32 %s13, %s20
      %p22 = scmp.eq.s32.totalorder %s21, 0
      %s24 = sadd.s32 %s23, 1
      %s25 = scalar_select %p22, %s23, %s24
      %p28 = pneg %p22
      %p29 = scmp.eq.s32.totalorder %s13, 1
      %p30 = por %p28, %p29
      %p31 = scmp.ne.s32.totalorder %s23, %s26
      %p32 = scmp.eq.s32.totalorder %s13, 0
      %p33 = por %p31, %p32
      %p34 = scmp.ne.s32.totalorder %s23, %s26
      %p35 = scmp.eq.s32.totalorder %s18, 1
      %p36 = por %p34, %p35
      %p37 = scmp.ne.s32.totalorder %s26, %s27
      %p38 = scmp.eq.s32.totalorder %s18, 0
      %p39 = por %p37, %p38
      %p40 = scmp.ne.s32.totalorder %s26, %s27
      %p41 = scmp.eq.s32.totalorder %s19, 1
      %p42 = por %p40, %p41
      %p44 = scmp.ne.s32.totalorder %s27, %s43
      %p45 = scmp.eq.s32.totalorder %s19, 0
      %p46 = por %p44, %p45
      %s47 = ssub.s32 %s13, %s20
      %p48 = scmp.eq.s32.totalorder %s47, 0
      %s50 = sadd.s32 %s49, 1
      %s51 = scalar_select %p48, %s49, %s50
      %p54 = pneg %p48
      %p55 = scmp.eq.s32.totalorder %s13, 1
      %p56 = por %p54, %p55
      %p57 = scmp.ne.s32.totalorder %s49, %s52
      %p58 = scmp.eq.s32.totalorder %s13, 0
      %p59 = por %p57, %p58
      %p60 = scmp.ne.s32.totalorder %s49, %s52
      %p61 = scmp.eq.s32.totalorder %s18, 1
      %p62 = por %p60, %p61
      %p63 = scmp.ne.s32.totalorder %s52, %s53
      %p64 = scmp.eq.s32.totalorder %s18, 0
      %p65 = por %p63, %p64
      %p66 = scmp.ne.s32.totalorder %s52, %s53
      %p67 = scmp.eq.s32.totalorder %s19, 1
      %p68 = por %p66, %p67
      %p70 = scmp.ne.s32.totalorder %s53, %s69
      %p71 = scmp.eq.s32.totalorder %s19, 0
      %p72 = por %p70, %p71
      %p73 = scmp.le.s32.totalorder 1, %s13
      %p74 = scmp.lt.s32.totalorder %s13, 3
      %p75 = pnand %p73, %p74
      %p76 = pneg %p75
      // Predicated region
      $region9: #{tpu_custom_call.1} parent=5 // pred_check
        _
      $region10: #{tpu_custom_call.1} parent=5 // pred_check_branch
        %78 = sbr.rel (%p75) target = $region12
      $region11: #{tpu_custom_call.1} parent=5 // pred_region
        %s79 = ssub.s32 %s13, 1
      $region12: #{tpu_custom_call.1} parent=5 // pred_fallthru
        _
      %p80 = scmp.lt.s32.totalorder %s13, 2
      // Predicated region
      $region13: #{tpu_custom_call.1} parent=5 // pred_check
        %p81 = pneg %p80
      $region14: #{tpu_custom_call.1} parent=5 // pred_check_branch
        %83 = sbr.rel (%p81) target = $region16
      $region15: #{tpu_custom_call.1} parent=5 // pred_region
        // Predicated region
        $region17: #{tpu_custom_call.1} parent=15 // pred_check
          %p84 = pneg %p33
        $region18: #{tpu_custom_call.1} parent=15 // pred_check_branch
          %86 = sbr.rel (%p84) target = $region20
        $region19: #{tpu_custom_call.1} parent=15 // pred_region
          %s87 = sand.u32 %s23, 1
          %s88 = scalar_lea.sflag [#allocation3], %s87
          %s89 = sand.u32 %s23, 1
          %s90 = smul.addr %s89, 8
          %s91 = scalar_lea.vmem [#allocation2], %s90
          %s93 = ssub.s32 128, 128
          %94 = vsyncadd %s88, %s93
          %s95 = smul.addr %s13, 128
          %s96 = scalar_lea.hbm %s0, %s95
          %s98 = sshll.u32 %s91, 4
          %s99 = int_to_ptr.vmem [resolvable:$true] %s98
          %101 = dma.hbm_to_vmem [thread:$0]  %s96, 128, %s99, %s88
        $region20: #{tpu_custom_call.1} parent=15 // pred_fallthru
          _
      $region16: #{tpu_custom_call.1} parent=5 // pred_fallthru
        _
      %p102 = scmp.le.s32.totalorder 1, %s13
      %p103 = scmp.lt.s32.totalorder %s13, 3
      %p104 = pnand %p102, %p103
      %p105 = pneg %p104
      // Predicated region
      $region21: #{tpu_custom_call.1} parent=5 // pred_check
        _
      $region22: #{tpu_custom_call.1} parent=5 // pred_check_branch
        %107 = sbr.rel (%p104) target = $region24
      $region23: #{tpu_custom_call.1} parent=5 // pred_region
        %s108 = ssub.s32 %s13, 1
        %s109 = sand.u32 %s26, 1
        %s110 = scalar_lea.sflag [#allocation3], %s109
        %s111 = sand.u32 %s26, 1
        %s112 = smul.addr %s111, 8
        %s113 = scalar_lea.vmem [#allocation2], %s112
        // Predicated region
        $region25: #{tpu_custom_call.1} parent=23 // pred_check
          %p114 = pneg %p39
        $region26: #{tpu_custom_call.1} parent=23 // pred_check_branch
          %116 = sbr.rel (%p114) target = $region28
        $region27: #{tpu_custom_call.1} parent=23 // pred_region
          %117 = dma.done %s110, 128
        $region28: #{tpu_custom_call.1} parent=23 // pred_fallthru
          _
        %s118 = sand.u32 %s26, 1
        %s119 = scalar_lea.sflag [#allocation3], %s118
        %s120 = sand.u32 %s26, 1
        %s121 = smul.addr %s120, 8
        %s122 = scalar_lea.vmem [#allocation2], %s121
        %p123 = pneg %p39
        %p124 = pneg %p36
        %p125 = pneg %p65
        %p126 = pneg %p62
        %s127 = sand.u32 %s52, 1
        %s128 = scalar_lea.sflag [#allocation4], %s127
        %s129 = sand.u32 %s52, 1
        %s130 = smul.addr %s129, 8
        %s131 = scalar_lea.vmem [#allocation5], %s130
        %v132 = vld [vmem:[%s113] sm:$0xff]
        %v133 = vmul.f32 %v132, %v132
        %vm134 = vcmask 261120
        %v135 = vsel %vm134, %v133, 0.0
        %136 = vadd.xlane.f32.xlu0 %v135
        %v137 = vpop.xlane.xlu0 %136
        %v138 = vrcp.pop 32.0
        %v139 = vmul.f32 %v137, %v138
        %v140 = vadd.f32 %v139, 1e-05
        %v141 = vrsqrt.pop %v140
        %v142 = vmul.f32 %v132, %v141
        %143 = vst.msk [vmem:[%s131] sm:$0xff] %vm134, %v142
        %s144 = sand.u32 %s52, 1
        %s145 = scalar_lea.sflag [#allocation4], %s144
        %s146 = sand.u32 %s52, 1
        %s147 = smul.addr %s146, 8
        %s148 = scalar_lea.vmem [#allocation5], %s147
        // Predicated region
        $region29: #{tpu_custom_call.1} parent=23 // pred_check
          %p149 = pneg %p62
        $region30: #{tpu_custom_call.1} parent=23 // pred_check_branch
          %151 = sbr.rel (%p149) target = $region32
        $region31: #{tpu_custom_call.1} parent=23 // pred_region
          %s153 = ssub.s32 128, 128
          %154 = vsyncadd %s145, %s153
          %s155 = smul.addr %s18, 128
          %s156 = scalar_lea.hbm %s1, %s155
          %s158 = sshll.u32 %s148, 4
          %s159 = int_to_ptr.vmem [resolvable:$true] %s158
          %161 = dma.vmem_to_hbm [thread:$0]  %s159, 128, %s156, %s145
        $region32: #{tpu_custom_call.1} parent=23 // pred_fallthru
          _
      $region24: #{tpu_custom_call.1} parent=5 // pred_fallthru
        _
      %p162 = scmp.le.s32.totalorder 2, %s13
      // Predicated region
      $region33: #{tpu_custom_call.1} parent=5 // pred_check
        %p163 = pneg %p162
      $region34: #{tpu_custom_call.1} parent=5 // pred_check_branch
        %165 = sbr.rel (%p163) target = $region36
      $region35: #{tpu_custom_call.1} parent=5 // pred_region
        %s166 = ssub.s32 %s13, 2
        // Predicated region
        $region37: #{tpu_custom_call.1} parent=35 // pred_check
          %p167 = pneg %p68
        $region38: #{tpu_custom_call.1} parent=35 // pred_check_branch
          %169 = sbr.rel (%p167) target = $region40
        $region39: #{tpu_custom_call.1} parent=35 // pred_region
          %s170 = sand.u32 %s53, 1
          %s171 = scalar_lea.sflag [#allocation4], %s170
          %s172 = sand.u32 %s53, 1
          %s173 = smul.addr %s172, 8
          %s174 = scalar_lea.vmem [#allocation5], %s173
          %175 = dma.done %s171, 128
        $region40: #{tpu_custom_call.1} parent=35 // pred_fallthru
          _
      $region36: #{tpu_custom_call.1} parent=5 // pred_fallthru
        _
    $region6: #{tpu_custom_call.1} parent=1 // loop_footer
      %s17 = sadd.s32 1, %s13
    $region7: #{tpu_custom_call.1} parent=1 // loop_footer_branch
      %12 = sbr.rel target = $region3
    $region8: #{tpu_custom_call.1} parent=1 // loop_exit
      _
    %176 = vsyncpa [#allocation3], 1
    %s177 = scalar_lea.sflag [#allocation3], 1
    %178 = vsyncpa %s177, 1
    %179 = vsyncpa [#allocation4], 1
    %s180 = scalar_lea.sflag [#allocation4], 1
    %181 = vsyncpa %s180, 1

</llo_original>
